<compile_context>
chip_gen: v6e
topology: v6e:2x2x1
jax: 0.10.0
libtpu: 0.0.40
codegen_flags: <defaults>
</compile_context>

<pallas_src>
import math

import jax
import jax.numpy as jnp
from jax.experimental import pallas as pl
from jax.experimental.pallas import tpu as pltpu

LANE = 128
SUBLANE = 8


def _device_block_config():
    """(block_bytes, vmem_limit_bytes) per TPU generation."""
    kind = ""
    try:
        kind = jax.devices()[0].device_kind.lower()
    except Exception:
        pass
    if "v7" in kind:
        # v7x: 3.2 TB/s HBM -> 8 MiB blocks keep the ~0.35us/step overhead <7%.
        # Double-buffered in+out at 8 MiB = 32 MiB, above the 32 MiB scoped
        # default but well inside the 64 MiB physical VMEM, so raise the limit.
        return 8 << 20, 48 << 20
    # v5e (16 MiB scoped default) and v6e already hit ~85% of roofline at 2 MiB.
    return 2 << 20, None


def _row_tile(n_rows, itemsize, block_bytes):
    """(8,128)-aligned row tile near block_bytes.  The grid uses cdiv, so the
    tile does NOT need to divide n_rows (the partial last block is masked)."""
    if n_rows <= SUBLANE:
        return n_rows  # full second-to-last dim: always legal
    max_rows = max(SUBLANE, (block_bytes // (LANE * itemsize)) // SUBLANE * SUBLANE)
    return min(max_rows, (n_rows // SUBLANE) * SUBLANE)


def _drop_path_kernel(scale_ref, x_ref, o_ref):
    """One tile of one sample: out = x * scale[sample].

    scale_ref: (B,) float32 in SMEM (scalar prefetch).  One cheap scalar read
    per tile; the multiply runs in the activation's native dtype."""
    b = pl.program_id(0)
    s = scale_ref[b].astype(o_ref.dtype)
    o_ref[...] = x_ref[...] * s


def _launch(scale, x3, block_spec, grid, dim_semantics, vmem_limit):
    cp_kwargs = {}
    if vmem_limit is not None:
        cp_kwargs["vmem_limit_bytes"] = vmem_limit
    return pl.pallas_call(
        _drop_path_kernel,
        out_shape=jax.ShapeDtypeStruct(x3.shape, x3.dtype),
        grid_spec=pltpu.PrefetchScalarGridSpec(
            num_scalar_prefetch=1,  # per-sample scales live in SMEM
            grid=grid,
            in_specs=[block_spec],
            out_specs=block_spec,
        ),
        # NOTE: input_output_aliases={1: 0} would let XLA reuse the input HBM
        # buffer, but only helps if x is donated at the jit boundary; without
        # donation XLA inserts an extra copy pass, so it is left off here.
        compiler_params=pltpu.CompilerParams(
            dimension_semantics=dim_semantics, **cp_kwargs
        ),
    )(scale, x3)


def drop_path(x, p, *, seed=0, key=None, training=True):
    """Stochastic depth: drop a sample's whole path with probability p."""
    if p is None or p == 0.0 or not training:
        return x  # identity, exactly like the PyTorch module's early return
    assert 0.0 < p < 1.0, "drop probability must be in (0, 1)"
    keep_prob = 1.0 - float(p)

    if key is None:
        key = jax.random.PRNGKey(seed)

    B = x.shape[0]
    N = math.prod(x.shape[1:]) if x.ndim > 1 else 1
    itemsize = jnp.dtype(x.dtype).itemsize
    block_bytes, vmem_limit = _device_block_config()

    # Per-sample draw hoisted out of the kernel.  torch: floor(kp + U[0,1)).
    u = jax.random.uniform(key, (B,), jnp.float32)
    scale = jnp.floor(jnp.float32(keep_prob) + u) * jnp.float32(1.0 / keep_prob)

    if N % LANE == 0:
        # Fast path: lane-dense (B, R, 128) view, no pad/slice HBM passes.
        R = N // LANE
        x3 = x.reshape(B, R, LANE)
        tr = _row_tile(R, itemsize, block_bytes)
        spec = pl.BlockSpec((None, tr, LANE), lambda b, r, scale: (b, r, 0))
        out = _launch(scale, x3, spec, (B, pl.cdiv(R, tr)),
                      ("parallel", "parallel"), vmem_limit)
        return out.reshape(x.shape)

    if N * itemsize <= (512 << 10):
        # Ragged feature count, small: one full-row block per sample (no pad).
        x3 = x.reshape(B, 1, N)
        spec = pl.BlockSpec((None, 1, N), lambda b, scale: (b, 0, 0))
        out = _launch(scale, x3, spec, (B,), ("parallel",), vmem_limit)
        return out.reshape(x.shape)

    # Ragged AND large (rare): pad the lane axis once.
    # TODO(synk): fold the ragged tail into the last block to avoid the pad/slice passes.
    pad = (-N) % LANE
    x2 = jnp.pad(x.reshape(B, N), ((0, 0), (0, pad)))
    Np = N + pad
    R = Np // LANE
    x3 = x2.reshape(B, R, LANE)
    tr = _row_tile(R, itemsize, block_bytes)
    spec = pl.BlockSpec((None, tr, LANE), lambda b, r, scale: (b, r, 0))
    out = _launch(scale, x3, spec, (B, pl.cdiv(R, tr)),
                  ("parallel", "parallel"), vmem_limit)
    return out.reshape(B, Np)[:, :N].reshape(x.shape)


if __name__ == "__main__":
    key = jax.random.PRNGKey(0)
    x = jax.random.normal(key, (2, 4, 16, 16), jnp.float32)

    # Identity paths (eval mode / p == 0): no kernel launch, same object back.
    assert drop_path(x, 0.35, training=False) is x
    assert drop_path(x, 0.0, training=True) is x

    # Training path: per-sample Bernoulli mask, kernel does the scaled multiply.
    p = 0.35
    kp = 1.0 - p
    f = jax.jit(lambda v: drop_path(v, p, seed=123, training=True))
    y = jax.block_until_ready(f(x))
    assert y.shape == x.shape and y.dtype == x.dtype
    for b in range(x.shape[0]):
        err_drop = float(jnp.max(jnp.abs(y[b])))               # fully dropped?
        err_keep = float(jnp.max(jnp.abs(y[b] - x[b] / kp)))   # or kept & scaled?
        assert min(err_drop, err_keep) < 1e-4, (b, err_drop, err_keep)

    # Determinism: same seed -> identical mask.
    y2 = jax.block_until_ready(f(x))
    assert float(jnp.max(jnp.abs(y - y2))) == 0.0

    # Native-dtype path (bf16): multiply happens in bf16 inside the kernel.
    x_bf = x.astype(jnp.bfloat16)
    y_bf = jax.block_until_ready(drop_path(x_bf, p, seed=123, training=True))
    assert y_bf.dtype == jnp.bfloat16 and y_bf.shape == x_bf.shape
    for b in range(x_bf.shape[0]):
        yb = y_bf[b].astype(jnp.float32)
        err_drop = float(jnp.max(jnp.abs(yb)))
        err_keep = float(jnp.max(jnp.abs(yb - x_bf[b].astype(jnp.float32) / kp)))
        assert min(err_drop, err_keep) < 6e-2, (b, err_drop, err_keep)

    # Ragged feature size exercises the no-pad full-row-block fallback.
    x_r = jax.random.normal(jax.random.fold_in(key, 1), (4, 5, 7, 9), jnp.float32)
    y_r = jax.block_until_ready(drop_path(x_r, 0.5, seed=7, training=True))
    assert y_r.shape == x_r.shape
    for b in range(x_r.shape[0]):
        err_drop = float(jnp.max(jnp.abs(y_r[b])))
        err_keep = float(jnp.max(jnp.abs(y_r[b] - x_r[b] / 0.5)))
        assert min(err_drop, err_keep) < 1e-4, (b, err_drop, err_keep)

    print("KERNEL_OK")
</pallas_src>

<mosaic_0001>
module attributes {stable_mosaic.version = 11 : i64} {
  func.func @_drop_path_kernel(%arg0: i32, %arg1: i32, %arg2: memref<2xf32, #tpu.memory_space<smem>>, %arg3: memref<1x8x128xf32, #tpu.memory_space<vmem>>, %arg4: memref<1x8x128xf32, #tpu.memory_space<vmem>>) attributes {dimension_semantics = [#tpu.dimension_semantics<parallel>, #tpu.dimension_semantics<parallel>], iteration_bounds = array<i64: 2, 1>, scalar_prefetch = 1 : i64, scratch_operands = 0 : i64, tpu.core_type = #tpu.core_type<tc>, window_params = [{transform_indices = @transform_0, window_bounds = array<i64: 1, 8, 128>}, {transform_indices = @transform_1, window_bounds = array<i64: 1, 8, 128>}]} {
    %0 = arith.index_cast %arg0 : i32 to index
    %1 = memref.load %arg2[%0] : memref<2xf32, #tpu.memory_space<smem>>
    %c0 = arith.constant 0 : index
    %c0_0 = arith.constant 0 : index
    %c0_1 = arith.constant 0 : index
    %2 = vector.load %arg3[%c0, %c0_0, %c0_1] : memref<1x8x128xf32, #tpu.memory_space<vmem>>, vector<1x8x128xf32>
    %3 = vector.shape_cast %2 : vector<1x8x128xf32> to vector<8x128xf32>
    %4 = vector.broadcast %1 : f32 to vector<8x128xf32>
    %5 = arith.mulf %3, %4 : vector<8x128xf32>
    %c0_2 = arith.constant 0 : index
    %c0_3 = arith.constant 0 : index
    %c0_4 = arith.constant 0 : index
    %6 = vector.load %arg4[%c0_2, %c0_3, %c0_4] : memref<1x8x128xf32, #tpu.memory_space<vmem>>, vector<1x8x128xf32>
    %7 = vector.shape_cast %6 : vector<1x8x128xf32> to vector<8x128xf32>
    %8 = vector.shape_cast %5 : vector<8x128xf32> to vector<1x8x128xf32>
    tpu.vector_store %arg4[%c0_2, %c0_3, %c0_4], %8 {strides = array<i32>} : memref<1x8x128xf32, #tpu.memory_space<vmem>>, vector<1x8x128xf32>,
    return
  }
  func.func @transform_0(%arg0: i32, %arg1: i32, %arg2: memref<2xf32, #tpu.memory_space<smem>>) -> (i32, i32, i32) {
    %c0_i32 = arith.constant 0 : i32
    %c0_i32_0 = arith.constant 0 : i32
    return %arg0, %arg1, %c0_i32 : i32, i32, i32
  }
  func.func @transform_1(%arg0: i32, %arg1: i32, %arg2: memref<2xf32, #tpu.memory_space<smem>>) -> (i32, i32, i32) {
    %c0_i32 = arith.constant 0 : i32
    %c0_i32_0 = arith.constant 0 : i32
    return %arg0, %arg1, %c0_i32 : i32, i32, i32
  }
}

</mosaic_0001>

<llo_original>
// kernel: _lambda_.1
$region0: #{_lambda_.1}
  #allocation0 [shape = 'u32[]', space=smem, size = 0x4, offset = 0x4, fixed_abs, tag = 'smem constant byte address 0x4 - core index']
  #allocation1 [shape = 'u32[144,128]{1,0:T(1,128)}', space=vmem, size = 0x12000, scoped, tag = 'internal scratch']
  #allocation2 [shape = 's32[1]{0}', space=sflag, size = 0x4, scoped, tag = 'scoped memory for _lambda_.1']
  #allocation3 [shape = 'u8[512]{0}', space=smem, size = 0x200, scoped, tag = 'prefetched SMEM operand 0']
  %s0 = inlined_call_operand.vmem [shape: f32[2], index: 0, kind: input, shape index: {}]
  %s1 = inlined_call_operand.vmem [shape: f32[2,8,128], index: 1, kind: input, shape index: {}]
  %s2 = inlined_call_operand.vmem [shape: f32[2,8,128], index: 2, kind: output, shape index: {}]
  %s3 = sld [smem:[#allocation0]]
  $region37: #{_lambda_.1} parent=0
    _
  %s5 = ssub.s32 1, %s3
  %s6 = scalar_select 0, %s5, %s3
  %s7 = sshll.u32 %s0, 4
  %s8 = int_to_ptr.vmem [resolvable:$true] %s7
  %10 = dma.vmem_to_smem %s8, 16, [#allocation3], [#allocation2]
  %11 = dma.done [#allocation2], 16
  %12 = sfence
  loop: start=0, step=1, limit=4
  $region2: #{_lambda_.1} parent=0 // loop_pre_header
    _
  $region3: #{_lambda_.1} parent=0 // loop_header
    %s14 = sphi 0, %s18
    %p15 = scmp.ge.s32.totalorder %s14, 4
    %s21 = sphi 0, %s33
    %s22 = sphi 0, %s29
    %s23 = sphi 0, %s21
    %s24 = sphi 0, %s22
    %s25 = sphi 0, %s23
    %s26 = sphi 0, %s24
    %s38 = sphi 0, %s40
    %s41 = sphi 0, %s38
    %s42 = sphi 0, %s41
    %s58 = sphi 0, %s42
    %s66 = sphi 0, %s68
    %s69 = sphi 0, %s66
    %s70 = sphi 0, %s69
    %s86 = sphi 0, %s70
  $region4: #{_lambda_.1} parent=0 // loop_header_branch
    %17 = sbr.rel (%p15) target = $region8
  $region5: #{_lambda_.1} parent=0 // loop_body
    %s19 = ssub.s32 %s14, 1
    %s20 = ssub.s32 %s14, 2
    %s27 = sadd.s32 1, %s22
    %p28 = scmp.ge.s32.totalorder %s27, 1
    %s29 = scalar_select %p28, 0, %s27
    %s30 = sadd.s32 1, %s21
    %s31 = scalar_select %p28, %s30, %s21
    %p32 = scmp.ge.s32.totalorder %s31, 2
    %s33 = scalar_select %p32, 0, %s31
    %s34 = ssub.s32 %s21, %s33
    %s35 = ssub.s32 %s22, %s29
    %s36 = sor.u32 %s34, %s35
    %p37 = scmp.eq.s32.totalorder %s36, 0
    %s39 = sadd.s32 %s38, 1
    %s40 = scalar_select %p37, %s38, %s39
    %p43 = pneg %p37
    %p44 = scmp.eq.s32.totalorder %s14, 1
    %p45 = por %p43, %p44
    %p46 = scmp.ne.s32.totalorder %s38, %s41
    %p47 = scmp.eq.s32.totalorder %s14, 0
    %p48 = por %p46, %p47
    %p49 = scmp.ne.s32.totalorder %s38, %s41
    %p50 = scmp.eq.s32.totalorder %s19, 1
    %p51 = por %p49, %p50
    %p52 = scmp.ne.s32.totalorder %s41, %s42
    %p53 = scmp.eq.s32.totalorder %s19, 0
    %p54 = por %p52, %p53
    %p55 = scmp.ne.s32.totalorder %s41, %s42
    %p56 = scmp.eq.s32.totalorder %s20, 1
    %p57 = por %p55, %p56
    %p59 = scmp.ne.s32.totalorder %s42, %s58
    %p60 = scmp.eq.s32.totalorder %s20, 0
    %p61 = por %p59, %p60
    %s62 = ssub.s32 %s21, %s33
    %s63 = ssub.s32 %s22, %s29
    %s64 = sor.u32 %s62, %s63
    %p65 = scmp.eq.s32.totalorder %s64, 0
    %s67 = sadd.s32 %s66, 1
    %s68 = scalar_select %p65, %s66, %s67
    %p71 = pneg %p65
    %p72 = scmp.eq.s32.totalorder %s14, 1
    %p73 = por %p71, %p72
    %p74 = scmp.ne.s32.totalorder %s66, %s69
    %p75 = scmp.eq.s32.totalorder %s14, 0
    %p76 = por %p74, %p75
    %p77 = scmp.ne.s32.totalorder %s66, %s69
    %p78 = scmp.eq.s32.totalorder %s19, 1
    %p79 = por %p77, %p78
    %p80 = scmp.ne.s32.totalorder %s69, %s70
    %p81 = scmp.eq.s32.totalorder %s19, 0
    %p82 = por %p80, %p81
    %p83 = scmp.ne.s32.totalorder %s69, %s70
    %p84 = scmp.eq.s32.totalorder %s20, 1
    %p85 = por %p83, %p84
    %p87 = scmp.ne.s32.totalorder %s70, %s86
    %p88 = scmp.eq.s32.totalorder %s20, 0
    %p89 = por %p87, %p88
    %p90 = scmp.le.s32.totalorder 1, %s14
    %p91 = scmp.lt.s32.totalorder %s14, 3
    %p92 = pnand %p90, %p91
    %p93 = pneg %p92
    // Predicated region
    $region9: #{_lambda_.1} parent=5 // pred_check
      _
    $region10: #{_lambda_.1} parent=5 // pred_check_branch
      %95 = sbr.rel (%p92) target = $region12
    $region11: #{_lambda_.1} parent=5 // pred_region
      %s96 = ssub.s32 %s14, 1
    $region12: #{_lambda_.1} parent=5 // pred_fallthru
      _
    %p97 = scmp.lt.s32.totalorder %s14, 2
    // Predicated region
    $region13: #{_lambda_.1} parent=5 // pred_check
      %p98 = pneg %p97
    $region14: #{_lambda_.1} parent=5 // pred_check_branch
      %100 = sbr.rel (%p98) target = $region16
    $region15: #{_lambda_.1} parent=5 // pred_region
      // Predicated region
      $region17: #{_lambda_.1} parent=15 // pred_check
        %p101 = pneg %p48
      $region18: #{_lambda_.1} parent=15 // pred_check_branch
        %103 = sbr.rel (%p101) target = $region20
      $region19: #{_lambda_.1} parent=15 // pred_region
        %p104 = scmp.lt.s32.totalorder %s21, 1
        %s105 = scalar_select %p104, %s21, 1
        %p106 = scmp.lt.s32.totalorder %s22, 0
        %s107 = scalar_select %p106, %s22, 0
        %s108 = sadd.s32 %s107, %s105
        %s109 = smul.addr %s108, 8
        %s110 = scalar_lea.vmem %s1, %s109
      $region20: #{_lambda_.1} parent=15 // pred_fallthru
        _
    $region16: #{_lambda_.1} parent=5 // pred_fallthru
      _
    %p111 = scmp.le.s32.totalorder 1, %s14
    %p112 = scmp.lt.s32.totalorder %s14, 3
    %p113 = pnand %p111, %p112
    %p114 = pneg %p113
    // Predicated region
    $region21: #{_lambda_.1} parent=5 // pred_check
      _
    $region22: #{_lambda_.1} parent=5 // pred_check_branch
      %116 = sbr.rel (%p113) target = $region24
    $region23: #{_lambda_.1} parent=5 // pred_region
      %s117 = ssub.s32 %s14, 1
      %p118 = scmp.lt.s32.totalorder %s23, 1
      %s119 = scalar_select %p118, %s23, 1
      %p120 = scmp.lt.s32.totalorder %s24, 0
      %s121 = scalar_select %p120, %s24, 0
      %s122 = sadd.s32 %s121, %s119
      %s123 = smul.addr %s122, 8
      %s124 = scalar_lea.vmem %s1, %s123
      %p125 = pneg %p54
      %p126 = pneg %p51
      %p127 = pneg %p82
      %p128 = pneg %p79
      %p129 = scmp.lt.s32.totalorder %s23, 1
      %s130 = scalar_select %p129, %s23, 1
      %p131 = scmp.lt.s32.totalorder %s24, 0
      %s132 = scalar_select %p131, %s24, 0
      %s133 = sadd.s32 %s132, %s130
      %s134 = smul.addr %s133, 8
      %s135 = scalar_lea.vmem %s2, %s134
      %p136 = scmp.lt.s32.totalorder %s23, 1
      %s137 = scalar_select %p136, %s23, 1
      %p138 = scmp.lt.s32.totalorder %s24, 0
      %s139 = scalar_select %p138, %s24, 0
      %s140 = sadd.s32 %s139, %s137
      %s141 = smul.addr %s140, 8
      %s142 = scalar_lea.vmem %s1, %s141
      %p143 = scmp.lt.s32.totalorder %s23, 1
      %s144 = scalar_select %p143, %s23, 1
      %p145 = scmp.lt.s32.totalorder %s24, 0
      %s146 = scalar_select %p145, %s24, 0
      %s147 = sadd.s32 %s146, %s144
      %s148 = smul.addr %s147, 8
      %s149 = scalar_lea.vmem %s2, %s148
      %s150 = sld [smem:[#allocation3 + %s23]]
      %v151 = vld [vmem:[%s142] sm:$0xff]
      %v152 = vstv %s150
      %v153 = vmul.f32 %v151, %v152
      %154 = vst [vmem:[%s149] sm:$0xff] %v153
      %p155 = scmp.lt.s32.totalorder %s23, 1
      %s156 = scalar_select %p155, %s23, 1
      %p157 = scmp.lt.s32.totalorder %s24, 0
      %s158 = scalar_select %p157, %s24, 0
      %s159 = sadd.s32 %s158, %s156
      %s160 = smul.addr %s159, 8
      %s161 = scalar_lea.vmem %s2, %s160
      // Predicated region
      $region25: #{_lambda_.1} parent=23 // pred_check
        %p162 = pneg %p79
      $region26: #{_lambda_.1} parent=23 // pred_check_branch
        %164 = sbr.rel (%p162) target = $region28
      $region27: #{_lambda_.1} parent=23 // pred_region
        _
      $region28: #{_lambda_.1} parent=23 // pred_fallthru
        _
    $region24: #{_lambda_.1} parent=5 // pred_fallthru
      _
    %p165 = scmp.le.s32.totalorder 2, %s14
    // Predicated region
    $region29: #{_lambda_.1} parent=5 // pred_check
      %p166 = pneg %p165
    $region30: #{_lambda_.1} parent=5 // pred_check_branch
      %168 = sbr.rel (%p166) target = $region32
    $region31: #{_lambda_.1} parent=5 // pred_region
      %s169 = ssub.s32 %s14, 2
      // Predicated region
      $region33: #{_lambda_.1} parent=31 // pred_check
        %p170 = pneg %p85
      $region34: #{_lambda_.1} parent=31 // pred_check_branch
        %172 = sbr.rel (%p170) target = $region36
      $region35: #{_lambda_.1} parent=31 // pred_region
        %p173 = scmp.lt.s32.totalorder %s25, 1
        %s174 = scalar_select %p173, %s25, 1
        %p175 = scmp.lt.s32.totalorder %s26, 0
        %s176 = scalar_select %p175, %s26, 0
        %s177 = sadd.s32 %s176, %s174
        %s178 = smul.addr %s177, 8
        %s179 = scalar_lea.vmem %s2, %s178
      $region36: #{_lambda_.1} parent=31 // pred_fallthru
        _
    $region32: #{_lambda_.1} parent=5 // pred_fallthru
      _
  $region6: #{_lambda_.1} parent=0 // loop_footer
    %s18 = sadd.s32 1, %s14
  $region7: #{_lambda_.1} parent=0 // loop_footer_branch
    %13 = sbr.rel target = $region3
  $region8: #{_lambda_.1} parent=0 // loop_exit
    _

</llo_original>
